<compile_context>
chip_gen: v6e
topology: v6e:2x2x1
jax: 0.10.0
libtpu: 0.0.40
codegen_flags: <defaults>
</compile_context>

<pallas_src>
import functools

import jax
import jax.numpy as jnp
from jax.experimental import pallas as pl
from jax.experimental.pallas import tpu as pltpu


def _cdiv(a: int, b: int) -> int:
    return (a + b - 1) // b


def _round_up(a: int, b: int) -> int:
    return _cdiv(a, b) * b


def _sublane(dtype) -> int:
    # Min second-minor tile: 8 for 32-bit, 16 for 16-bit, 32 for 8-bit dtypes.
    return {4: 8, 2: 16, 1: 32}[jnp.dtype(dtype).itemsize]


def _linear_kernel(x_ref, w_ref, b_ref, o_ref):
    # Single-K-tile path: one MXU dot, fused bias add + cast + store.
    o_ref[...] = (
        jnp.dot(x_ref[...], w_ref[...], preferred_element_type=jnp.float32)
        + b_ref[...]
    ).astype(o_ref.dtype)


def _linear_kernel_acc(x_ref, w_ref, b_ref, o_ref, acc_ref):
    # K-split path: resident f32 accumulator, init at k==0, fused epilogue at k==last.
    k = pl.program_id(2)

    @pl.when(k == 0)
    def _():
        acc_ref[...] = jnp.zeros_like(acc_ref)

    acc_ref[...] += jnp.dot(x_ref[...], w_ref[...],
                            preferred_element_type=jnp.float32)

    @pl.when(k == pl.num_programs(2) - 1)
    def _():
        o_ref[...] = (acc_ref[...] + b_ref[...]).astype(o_ref.dtype)


@functools.partial(
    jax.jit, static_argnames=("compute_dtype", "tm_max", "tn_max", "tk_max"))
def linear_forward(x, w_t, bias2d, *, compute_dtype=jnp.bfloat16,
                   tm_max=512, tn_max=512, tk_max=1024):
    """y = x @ w_t + bias2d, with w_t already in (K, N) layout.

    x:      (M, K)  — any float dtype; output keeps this dtype.
    w_t:    (K, N)  — pre-transposed weight (cast once at prep time).
    bias2d: (1, N)  float32.
    """
    M, K = x.shape
    K2, N = w_t.shape
    assert K == K2, (K, K2)
    out_dtype = x.dtype
    sub = _sublane(compute_dtype)

    # ---- tile selection ----------------------------------------------------
    if M <= 256:
        # GEMV-ish inference path: x fully resident along M; stream W once
        # (no re-reads) with deeper K / wider N tiles.
        tm = _round_up(M, sub)
        tn_cap, tk_cap = max(tn_max, 1024), max(tk_max, 2048)
    else:
        # Balanced M tiles (avoid a mostly-padded last tile for awkward M).
        tm = _round_up(_cdiv(M, _cdiv(M, tm_max)), sub)
        tn_cap, tk_cap = tn_max, tk_max
    # Balanced, lane-aligned N tiles.  NOTE(v7x): keep M/tm * N/tn >= 2 where
    # possible so both TensorCores stay fed via the parallel grid axes.
    tn = _round_up(_cdiv(N, _cdiv(N, tn_cap)), 128)

    # Single-pass wrapper-side cast of x; W was cast once at prep time.
    x_c = x.astype(compute_dtype)
    w_c = w_t if w_t.dtype == jnp.dtype(compute_dtype) else w_t.astype(compute_dtype)

    cost = pl.CostEstimate(
        flops=2 * M * N * K,
        transcendentals=0,
        bytes_accessed=(x_c.size * x_c.dtype.itemsize
                        + w_c.size * w_c.dtype.itemsize
                        + bias2d.size * 4
                        + M * N * jnp.dtype(out_dtype).itemsize),
    )
    vmem_limit = 48 * 1024 * 1024  # headroom even on v7x (64 MiB / TC)

    nm, nn = _cdiv(M, tm), _cdiv(N, tn)

    if K <= tk_cap:
        # ---- single K tile: no padding, no accumulator, 2-D grid ----------
        tk = K  # full-dim block along K is always legal; MXU pads internally.
        return pl.pallas_call(
            _linear_kernel,
            out_shape=jax.ShapeDtypeStruct((M, N), out_dtype),
            grid=(nm, nn),
            in_specs=[
                pl.BlockSpec((tm, tk), lambda i, j: (i, 0)),  # x tile
                pl.BlockSpec((tk, tn), lambda i, j: (0, j)),  # W (K, N) tile
                pl.BlockSpec((1, tn), lambda i, j: (0, j)),   # bias tile
            ],
            out_specs=pl.BlockSpec((tm, tn), lambda i, j: (i, j)),
            compiler_params=pltpu.CompilerParams(
                dimension_semantics=("parallel", "parallel"),
                vmem_limit_bytes=vmem_limit,
            ),
            cost_estimate=cost,
        )(x_c, w_c, bias2d)

    # ---- K-split path: 3-D grid with resident f32 accumulator --------------
    # Pick tk so the K pad usually vanishes; zero-pad K only when it doesn't
    # (Pallas does NOT zero-fill out-of-bounds input blocks, and K is the
    # contraction dim, so garbage there would corrupt the accumulation).
    nk = _cdiv(K, tk_cap)
    tk = _round_up(_cdiv(K, nk), 128)
    nk = _cdiv(K, tk)
    Kp = nk * tk
    if Kp != K:
        x_c = jnp.pad(x_c, ((0, 0), (0, Kp - K)))
        w_c = jnp.pad(w_c, ((0, Kp - K), (0, 0)))

    return pl.pallas_call(
        _linear_kernel_acc,
        out_shape=jax.ShapeDtypeStruct((M, N), out_dtype),
        grid=(nm, nn, nk),
        in_specs=[
            pl.BlockSpec((tm, tk), lambda i, j, k: (i, k)),  # x tile
            pl.BlockSpec((tk, tn), lambda i, j, k: (k, j)),  # W (K, N) tile
            pl.BlockSpec((1, tn), lambda i, j, k: (0, j)),   # bias tile
        ],
        out_specs=pl.BlockSpec((tm, tn), lambda i, j, k: (i, j)),
        scratch_shapes=[pltpu.VMEM((tm, tn), jnp.float32)],
        compiler_params=pltpu.CompilerParams(
            dimension_semantics=("parallel", "parallel", "arbitrary"),
            vmem_limit_bytes=vmem_limit,
        ),
        cost_estimate=cost,
    )(x_c, w_c, bias2d)


class PallasLinear:
    """PyTorch nn.Linear(input_dim, output_dim) forward on TPU via Pallas."""

    def __init__(self, weight, bias, compute_dtype=jnp.bfloat16):
        # One-time (load-time) parameter prep:
        #   (N, K) -> (K, N) transpose + cast to the compute dtype.
        self.compute_dtype = compute_dtype
        self.w_t = jnp.asarray(weight).astype(compute_dtype).T   # (K, N)
        self.bias2d = jnp.asarray(bias, dtype=jnp.float32).reshape(1, -1)

    def __call__(self, x):
        return linear_forward(x, self.w_t, self.bias2d,
                              compute_dtype=self.compute_dtype)


if __name__ == "__main__":
    # Small shapes consistent with the module: input_dim=32, output_dim=16, batch=8.
    batch, input_dim, output_dim = 8, 32, 16

    key = jax.random.PRNGKey(0)
    kx, kw, kb = jax.random.split(key, 3)

    # Deterministic PyTorch-style init: U(-1/sqrt(in), 1/sqrt(in)).
    bound = 1.0 / (input_dim ** 0.5)
    weight = jax.random.uniform(kw, (output_dim, input_dim),
                                minval=-bound, maxval=bound, dtype=jnp.float32)
    bias = jax.random.uniform(kb, (output_dim,),
                              minval=-bound, maxval=bound, dtype=jnp.float32)
    x = jax.random.normal(kx, (batch, input_dim), dtype=jnp.float32)

    y_ref = x @ weight.T + bias

    # Production path: bf16 tiles, f32 MXU accumulation.
    model = PallasLinear(weight, bias)                     # bf16 compute
    y = model(x)
    jax.block_until_ready(y)
    assert y.shape == (batch, output_dim)
    assert y.dtype == x.dtype
    assert jnp.allclose(y, y_ref, atol=5e-2, rtol=5e-2), \
        float(jnp.max(jnp.abs(y - y_ref)))

    # Structural exactness check with f32 compute (tight tolerance).
    model_f32 = PallasLinear(weight, bias, compute_dtype=jnp.float32)
    y32 = model_f32(x)
    jax.block_until_ready(y32)
    assert jnp.allclose(y32, y_ref, atol=1e-5, rtol=1e-5)

    print("KERNEL_OK")
</pallas_src>

<mosaic_0001>
module attributes {stable_mosaic.version = 11 : i64} {
  func.func @_linear_kernel(%arg0: i32, %arg1: i32, %arg2: memref<16x32xbf16, #tpu.memory_space<vmem>>, %arg3: memref<32x128xbf16, #tpu.memory_space<vmem>>, %arg4: memref<1x128xf32, #tpu.memory_space<vmem>>, %arg5: memref<16x128xf32, #tpu.memory_space<vmem>>) attributes {dimension_semantics = [#tpu.dimension_semantics<parallel>, #tpu.dimension_semantics<parallel>], iteration_bounds = array<i64: 1, 1>, scalar_prefetch = 0 : i64, scratch_operands = 0 : i64, tpu.core_type = #tpu.core_type<tc>, window_params = [{transform_indices = @transform_0, window_bounds = array<i64: 16, 32>}, {transform_indices = @transform_1, window_bounds = array<i64: 32, 128>}, {transform_indices = @transform_2, window_bounds = array<i64: 1, 128>}, {transform_indices = @transform_3, window_bounds = array<i64: 16, 128>}]} {
    %c0 = arith.constant 0 : index
    %c0_0 = arith.constant 0 : index
    %0 = vector.load %arg2[%c0, %c0_0] : memref<16x32xbf16, #tpu.memory_space<vmem>>, vector<16x32xbf16>
    %c0_1 = arith.constant 0 : index
    %c0_2 = arith.constant 0 : index
    %1 = vector.load %arg3[%c0_1, %c0_2] : memref<32x128xbf16, #tpu.memory_space<vmem>>, vector<32x128xbf16>
    %cst = arith.constant dense<0.000000e+00> : vector<16x128xf32>
    %2 = tpu.matmul %0, %1, %cst {dimension_numbers = #tpu.dot_dimension_numbers<[1], [0], [0], [1], [0, 0, 1, 1], [], []>} : vector<16x32xbf16>, vector<32x128xbf16>, vector<16x128xf32> -> vector<16x128xf32>
    %c0_3 = arith.constant 0 : index
    %c0_4 = arith.constant 0 : index
    %3 = vector.load %arg4[%c0_3, %c0_4] : memref<1x128xf32, #tpu.memory_space<vmem>>, vector<1x128xf32>
    %4 = vector.broadcast %3 : vector<1x128xf32> to vector<16x128xf32>
    %5 = arith.addf %2, %4 : vector<16x128xf32>
    %c0_5 = arith.constant 0 : index
    %c0_6 = arith.constant 0 : index
    %6 = vector.load %arg5[%c0_5, %c0_6] : memref<16x128xf32, #tpu.memory_space<vmem>>, vector<16x128xf32>
    tpu.vector_store %arg5[%c0_5, %c0_6], %5 {strides = array<i32>} : memref<16x128xf32, #tpu.memory_space<vmem>>, vector<16x128xf32>,
    return
  }
  func.func @transform_0(%arg0: i32, %arg1: i32) -> (i32, i32) {
    %c0_i32 = arith.constant 0 : i32
    %c0_i32_0 = arith.constant 0 : i32
    return %arg0, %c0_i32 : i32, i32
  }
  func.func @transform_1(%arg0: i32, %arg1: i32) -> (i32, i32) {
    %c0_i32 = arith.constant 0 : i32
    %c0_i32_0 = arith.constant 0 : i32
    return %c0_i32, %arg1 : i32, i32
  }
  func.func @transform_2(%arg0: i32, %arg1: i32) -> (i32, i32) {
    %c0_i32 = arith.constant 0 : i32
    %c0_i32_0 = arith.constant 0 : i32
    return %c0_i32, %arg1 : i32, i32
  }
  func.func @transform_3(%arg0: i32, %arg1: i32) -> (i32, i32) {
    %c0_i32 = arith.constant 0 : i32
    return %arg0, %arg1 : i32, i32
  }
}

</mosaic_0001>

<llo_original>
// kernel: linear_forward.1
$region0: #{linear_forward.1}
  #allocation0 [shape = 'u32[]', space=smem, size = 0x4, offset = 0x4, fixed_abs, tag = 'smem constant byte address 0x4 - core index']
  #allocation1 [shape = 'u32[144,128]{1,0:T(1,128)}', space=vmem, size = 0x12000, scoped, tag = 'internal scratch']
  %s0 = inlined_call_operand.vmem [shape: bf16[8,32], index: 0, kind: input, shape index: {}]
  %s1 = inlined_call_operand.vmem [shape: bf16[32,16], index: 1, kind: input, shape index: {}]
  %s2 = inlined_call_operand.vmem [shape: f32[1,16], index: 2, kind: input, shape index: {}]
  %s3 = inlined_call_operand.hbm [shape: f32[8,16], index: 3, kind: output, shape index: {}]
  %s4 = sld [smem:[#allocation0]]
  $region22: #{linear_forward.1} parent=0
    _
  %s6 = ssub.s32 1, %s4
  %s7 = scalar_select 0, %s6, %s4
  $region1: #{linear_forward.1} parent=0
    #allocation2 [shape = 'u8[8192]{0}', space=vmem, size = 0x2000, scoped, tag = 'output window, operand 0, single buffered']
    #allocation3 [shape = 's32[1]{0}', space=sflag, size = 0x4, scoped, tag = 'scoped memory for linear_forward.1']
    %8 = vsyncpa [#allocation3], 0
    // Predicated region
    $region2: #{linear_forward.1} parent=1 // pred_check
      _
    $region3: #{linear_forward.1} parent=1 // pred_check_branch
      %10 = sbr.rel (0) target = $region5
    $region4: #{linear_forward.1} parent=1 // pred_region
      _
    $region5: #{linear_forward.1} parent=1 // pred_fallthru
      _
    // Predicated region
    $region6: #{linear_forward.1} parent=1 // pred_check
      _
    $region7: #{linear_forward.1} parent=1 // pred_check_branch
      %12 = sbr.rel (0) target = $region9
    $region8: #{linear_forward.1} parent=1 // pred_region
      _
    $region9: #{linear_forward.1} parent=1 // pred_fallthru
      _
    // Predicated region
    $region10: #{linear_forward.1} parent=1 // pred_check
      _
    $region11: #{linear_forward.1} parent=1 // pred_check_branch
      %14 = sbr.rel (0) target = $region13
    $region12: #{linear_forward.1} parent=1 // pred_region
      _
    $region13: #{linear_forward.1} parent=1 // pred_fallthru
      _
    %v16 = vld [vmem:[%s0] sm:$0xf]
    %v17 = vld [vmem:[%s0 + $0x4] sm:$0xf]
    %v18 = vld [vmem:[%s1] sm:$0xf]
    %v19 = vld [vmem:[%s1 + $0x4] sm:$0xf]
    %v20 = vld [vmem:[%s1 + $0x8] sm:$0xf]
    %v21 = vld [vmem:[%s1 + $0xc] sm:$0xf]
    %v22 = vld [vmem:[%s2] sm:$0x1]
    %v24 = vlaneseq
    %v25 = vshrl.u32 %v24, 7
    %v26 = vsub.s32 0, %v25
    %v27 = vrot.slane %v22, %v26
    %v31 = vunpack.c.l.b16 %v16
    %v32 = vunpack.c.l.b16 %v17
    %v33 = vpack.c.b16 %v32, %v31
    %v38 = vunpack.c.l.b16 %v18
    %v39 = vunpack.c.l.b16 %v19
    %v40 = vunpack.c.l.b16 %v20
    %v41 = vunpack.c.l.b16 %v21
    %v42 = vpack.c.b16 %v39, %v38
    %v43 = vpack.c.b16 %v41, %v40
    %vm46 = vcmask 261120
    %v48 = vsel %vm46, %v33, 0
    %50 = vmatprep.subr.bf16.mxu0 0
    %51 = vmatpush1.bf16.msra.mxu0 0
    %52 = vmatprep.subr.bf16.mxu0 0
    %53 = vmatpush1.bf16.msra.mxu0 0
    %54 = vmatprep.subr.bf16.mxu0 0
    %55 = vmatpush1.bf16.msra.mxu0 0
    %56 = vmatprep.subr.bf16.mxu0 0
    %57 = vmatpush1.bf16.msra.mxu0 0
    %58 = vmatprep.subr.bf16.mxu0 0
    %59 = vmatpush1.bf16.msra.mxu0 0
    %60 = vmatprep.subr.bf16.mxu0 0
    %61 = vmatpush1.bf16.msra.mxu0 0
    %62 = vmatprep.subr.bf16.mxu0 0
    %63 = vmatpush1.bf16.msra.mxu0 %v43
    %64 = vmatprep.subr.bf16.mxu0 0
    %65 = vmatpush1.bf16.msra.mxu0 %v42
    %66 = vmatprep.subr.bf16.mxu0 0
    %67 = vmatpush2.bf16.msra.mxu0 0
    %68 = vmatprep.subr.bf16.mxu0 0
    %69 = vmatpush2.bf16.msra.mxu0 0
    %70 = vmatprep.subr.bf16.mxu0 0
    %71 = vmatpush2.bf16.msra.mxu0 0
    %72 = vmatprep.subr.bf16.mxu0 0
    %73 = vmatpush2.bf16.msra.mxu0 0
    %74 = vmatprep.subr.bf16.mxu0 0
    %75 = vmatpush2.bf16.msra.mxu0 0
    %76 = vmatprep.subr.bf16.mxu0 0
    %77 = vmatpush2.bf16.msra.mxu0 0
    %78 = vmatprep.subr.bf16.mxu0 0
    %79 = vmatpush2.bf16.msra.mxu0 0
    %80 = vmatprep.subr.bf16.mxu0 0
    %81 = vmatpush2.bf16.msra.mxu0 0
    %82 = vmatprep.mubr.bf16.mxu0 0
    %83 = vmatmul.mubr.bf16.gmra.mxu0 %v48
    %v84 = vpop.f32.mrf.mxu0
    %v85 = vadd.f32 %v27, %v84
    %v86 = vpop.f32.mrf.mxu0
    %v87 = vpop.f32.mrf.mxu0
    %v88 = vadd.f32 %v27, %v87
    %v89 = vpop.f32.mrf.mxu0
    %90 = vdwg.mxu0
    %91 = vst [vmem:[#allocation2] sm:$0xff] %v85
    %92 = vst [vmem:[#allocation2 + $0x8] sm:$0xff] %v88
    // Predicated region
    $region14: #{linear_forward.1} parent=1 // pred_check
      _
    $region15: #{linear_forward.1} parent=1 // pred_check_branch
      %94 = sbr.rel (0) target = $region17
    $region16: #{linear_forward.1} parent=1 // pred_region
      %s96 = ssub.s32 256, 128
      %97 = vsyncadd [#allocation3], %s96
      %s98 = sshll.u32 [#allocation2], 4
      %s99 = int_to_ptr.vmem [resolvable:$true] %s98
      %104 = dma.vmem_to_hbm [thread:$0]  %s99, 128, %s3, [#allocation3], 128, 128, 8
    $region17: #{linear_forward.1} parent=1 // pred_fallthru
      _
    // Predicated region
    $region18: #{linear_forward.1} parent=1 // pred_check
      _
    $region19: #{linear_forward.1} parent=1 // pred_check_branch
      %106 = sbr.rel (0) target = $region21
    $region20: #{linear_forward.1} parent=1 // pred_region
      %107 = dma.done [#allocation3], 256
    $region21: #{linear_forward.1} parent=1 // pred_fallthru
      _
    %108 = vsyncpa [#allocation3], 1

</llo_original>
